<compile_context>
chip_gen: v6e
topology: v6e:2x2x1
jax: 0.10.0
libtpu: 0.0.40
codegen_flags: <defaults>
</compile_context>

<pallas_src>
import jax
import jax.numpy as jnp
from jax.experimental import pallas as pl
from jax.experimental.pallas import tpu as pltpu

LANES = 128
TARGET_TILE_ROWS = 8192  # 4 MiB per f32 input block


def _round_up(a, b):
    return ((a + b - 1) // b) * b


def _num_tensorcores():
    """Best-effort TensorCore-per-chip count; default 1 (safe on v5e/v6e)."""
    try:
        info = pltpu.get_tpu_info()
        for attr in ("num_cores", "core_count", "num_tensorcores",
                     "tensorcore_count", "num_cores_per_chip"):
            v = getattr(info, attr, None)
            if isinstance(v, int) and v > 0:
                return v
    except Exception:
        pass
    try:
        d = jax.devices()[0]
        v = getattr(d, "num_cores", None)
        if isinstance(v, int) and v > 0:
            return v
        if "v7" in str(getattr(d, "device_kind", "")).lower():
            return 2
    except Exception:
        pass
    return 1


def _make_joint_loss_kernel(alpha, beta, *, inner, tile_rows, valid_rows, needs_mask):
    alpha = float(alpha)
    beta = float(beta)

    def kernel(x_ref, gt_ref, tgt_ref, out_ref, mse_acc, bce_acc):
        i = pl.program_id(1)

        @pl.when(i == 0)
        def _():
            mse_acc[...] = jnp.zeros_like(mse_acc)
            bce_acc[...] = jnp.zeros_like(bce_acc)

        x = x_ref[...].astype(jnp.float32)
        gt = gt_ref[...].astype(jnp.float32)
        tgt = tgt_ref[...].astype(jnp.float32)

        # MSELoss(size_average=False): sum of squared differences.
        diff = x - gt
        mse_c = diff * diff

        # BCELoss(size_average=False): sum of -(t*log(x) + (1-t)*log(1-x)),
        # each log term clamped at -100 (PyTorch semantics).
        log_x = jnp.maximum(jnp.log(x), -100.0)
        log_1mx = jnp.maximum(jnp.log1p(-x), -100.0)
        # t*log_x + (1-t)*log_1mx == t*(log_x - log_1mx) + log_1mx (post-clamp)
        bce_c = tgt * (log_x - log_1mx) + log_1mx

        if needs_mask:
            # Mask rows past the real data (ragged last tile / clamped extra
            # grid step).  Use jnp.where on the contribution, NOT multiply,
            # so NaN/-inf from logs of garbage never propagates.
            row0 = (pl.program_id(0) * inner + i) * tile_rows
            gidx = jax.lax.broadcasted_iota(jnp.int32, (tile_rows, LANES), 0) + row0
            valid = gidx < valid_rows
            mse_c = jnp.where(valid, mse_c, 0.0)
            bce_c = jnp.where(valid, bce_c, 0.0)

        # Fold tile into vreg-sized accumulators: pure VALU vreg adds.
        mse_acc[...] += jnp.sum(mse_c.reshape(-1, 8, LANES), axis=0)
        bce_acc[...] += jnp.sum(bce_c.reshape(-1, 8, LANES), axis=0)

        @pl.when(i == pl.num_programs(1) - 1)
        def _():
            mse_lane = jnp.sum(mse_acc[...], axis=0, keepdims=True)  # (1, LANES)
            bce_lane = jnp.sum(bce_acc[...], axis=0, keepdims=True)  # (1, LANES)
            # loss contribution = alpha*sum(mse) + beta*(-sum(bce_acc))
            out_ref[...] = (alpha * mse_lane - beta * bce_lane)[None, :, :]

    return kernel


def joint_loss(x, gt_map, target_map, alpha=0.7, beta=0.3):
    total = x.size

    # --- Lane-dense slab, with at most a tiny (<128-elem) neutral pad. ---
    pad = (-total) % LANES
    rows = (total + pad) // LANES

    def prep(a):
        flat = a.reshape(-1)                        # free reshape
        if pad:
            # Rare path (total not a multiple of 128): 1.0 is exactly neutral
            # for both the MSE and the clamped-BCE terms.
            flat = jnp.pad(flat, (0, pad), constant_values=1)
        return flat.reshape(rows, LANES)

    xf, gf, tf = prep(x), prep(gt_map), prep(target_map)

    # --- Tiling / grid. ---
    tile_rows = min(TARGET_TILE_ROWS, _round_up(max(rows, 1), 16))  # bf16-safe
    num_tiles = -(-rows // tile_rows)
    n_outer = 2 if (_num_tensorcores() >= 2 and num_tiles >= 2) else 1
    grid_tiles = _round_up(num_tiles, n_outer)
    inner = grid_tiles // n_outer
    needs_mask = grid_tiles * tile_rows > rows

    if grid_tiles > num_tiles:
        # Extra rounded-up step: clamp to the last real tile; it is fully
        # masked to zero inside the kernel.
        def in_map(o, i):
            return (jnp.minimum(o * inner + i, num_tiles - 1), 0)
    else:
        def in_map(o, i):
            return (o * inner + i, 0)

    tile_spec = pl.BlockSpec((tile_rows, LANES), in_map)
    out_spec = pl.BlockSpec((1, 1, LANES), lambda o, i: (o, 0, 0))

    # --- VMEM budget: 3 inputs x 2 pipeline buffers + 2 vreg accs + slack. ---
    in_block_bytes = sum(tile_rows * LANES * a.dtype.itemsize for a in (xf, gf, tf))
    acc_bytes = 2 * 8 * LANES * 4
    vmem_needed = 2 * in_block_bytes + acc_bytes + (2 << 20)
    vmem_limit = int(min(max(vmem_needed, 16 << 20), 40 << 20))

    in_bytes = sum(a.size * a.dtype.itemsize for a in (xf, gf, tf))
    cost = pl.CostEstimate(
        flops=10 * total,
        transcendentals=2 * total,
        bytes_accessed=in_bytes + n_outer * LANES * 4,
    )

    out = pl.pallas_call(
        _make_joint_loss_kernel(alpha, beta, inner=inner, tile_rows=tile_rows,
                                valid_rows=rows, needs_mask=needs_mask),
        out_shape=jax.ShapeDtypeStruct((n_outer, 1, LANES), jnp.float32),
        grid_spec=pltpu.PrefetchScalarGridSpec(
            num_scalar_prefetch=0,
            grid=(n_outer, inner),
            in_specs=[tile_spec, tile_spec, tile_spec],
            out_specs=out_spec,
            scratch_shapes=[
                pltpu.VMEM((8, LANES), jnp.float32),
                pltpu.VMEM((8, LANES), jnp.float32),
            ],
        ),
        compiler_params=pltpu.CompilerParams(
            dimension_semantics=("parallel", "arbitrary"),
            vmem_limit_bytes=vmem_limit,
        ),
        cost_estimate=cost,
    )(xf, gf, tf)

    return jnp.sum(out)


def _reference(x, gt_map, target_map, alpha=0.7, beta=0.3):
    x = x.astype(jnp.float32)
    gt = gt_map.astype(jnp.float32)
    tgt = target_map.astype(jnp.float32)
    mse = jnp.sum((x - gt) ** 2) * alpha
    log_x = jnp.maximum(jnp.log(x), -100.0)
    log_1mx = jnp.maximum(jnp.log1p(-x), -100.0)
    bce = -jnp.sum(tgt * log_x + (1.0 - tgt) * log_1mx) * beta
    return mse + bce


if __name__ == "__main__":
    key = jax.random.PRNGKey(0)
    k1, k2, k3 = jax.random.split(key, 3)

    B, C, H, W = 2, 4, 16, 16  # NCHW, matching the PyTorch convention
    # x must lie in (0, 1) for BCELoss; use a sigmoid of Gaussian noise.
    x = jax.nn.sigmoid(jax.random.normal(k1, (B, C, H, W), jnp.float32))
    gt_map = jax.random.normal(k2, (B, C, H, W), jnp.float32)
    target_map = jax.random.uniform(k3, (B, C, H, W), jnp.float32)

    loss = joint_loss(x, gt_map, target_map, alpha=0.7, beta=0.3)
    jax.block_until_ready(loss)

    ref = _reference(x, gt_map, target_map, 0.7, 0.3)
    assert jnp.allclose(loss, ref, rtol=1e-5, atol=1e-4), (loss, ref)

    # TODO(synk): the original forward writes mse/bce to sys.stdout per call;
    # host-side printing has no Pallas equivalent and is omitted.
    print("KERNEL_OK")
</pallas_src>

<mosaic_0001>
module attributes {stable_mosaic.version = 11 : i64} {
  func.func @kernel(%arg0: i32, %arg1: i32, %arg2: memref<16x128xf32, #tpu.memory_space<vmem>>, %arg3: memref<16x128xf32, #tpu.memory_space<vmem>>, %arg4: memref<16x128xf32, #tpu.memory_space<vmem>>, %arg5: memref<1x1x128xf32, #tpu.memory_space<vmem>>, %arg6: memref<8x128xf32, #tpu.memory_space<vmem>>, %arg7: memref<8x128xf32, #tpu.memory_space<vmem>>) attributes {dimension_semantics = [#tpu.dimension_semantics<parallel>, #tpu.dimension_semantics<arbitrary>], iteration_bounds = array<i64: 1, 1>, scalar_prefetch = 0 : i64, scratch_operands = 2 : i64, tpu.core_type = #tpu.core_type<tc>, window_params = [{transform_indices = @transform_0, window_bounds = array<i64: 16, 128>}, {transform_indices = @transform_1, window_bounds = array<i64: 16, 128>}, {transform_indices = @transform_2, window_bounds = array<i64: 16, 128>}, {transform_indices = @transform_3, window_bounds = array<i64: 1, 1, 128>}]} {
    %c0_i32 = arith.constant 0 : i32
    %0 = arith.cmpi eq, %arg1, %c0_i32 : i32
    %1 = arith.extui %0 : i1 to i32
    %c0_i32_0 = arith.constant 0 : i32
    %2 = arith.cmpi ne, %1, %c0_i32_0 : i32
    scf.if %2 {
      %cst_20 = arith.constant 0.000000e+00 : f32
      %32 = vector.broadcast %cst_20 : f32 to vector<8x128xf32>
      %c0_21 = arith.constant 0 : index
      %c0_22 = arith.constant 0 : index
      %33 = vector.load %arg6[%c0_21, %c0_22] : memref<8x128xf32, #tpu.memory_space<vmem>>, vector<8x128xf32>
      tpu.vector_store %arg6[%c0_21, %c0_22], %32 {strides = array<i32>} : memref<8x128xf32, #tpu.memory_space<vmem>>, vector<8x128xf32>,
      %cst_23 = arith.constant 0.000000e+00 : f32
      %34 = vector.broadcast %cst_23 : f32 to vector<8x128xf32>
      %c0_24 = arith.constant 0 : index
      %c0_25 = arith.constant 0 : index
      %35 = vector.load %arg7[%c0_24, %c0_25] : memref<8x128xf32, #tpu.memory_space<vmem>>, vector<8x128xf32>
      tpu.vector_store %arg7[%c0_24, %c0_25], %34 {strides = array<i32>} : memref<8x128xf32, #tpu.memory_space<vmem>>, vector<8x128xf32>,
    } else {
    }
    %c0 = arith.constant 0 : index
    %c0_1 = arith.constant 0 : index
    %3 = vector.load %arg2[%c0, %c0_1] : memref<16x128xf32, #tpu.memory_space<vmem>>, vector<16x128xf32>
    %c0_2 = arith.constant 0 : index
    %c0_3 = arith.constant 0 : index
    %4 = vector.load %arg3[%c0_2, %c0_3] : memref<16x128xf32, #tpu.memory_space<vmem>>, vector<16x128xf32>
    %c0_4 = arith.constant 0 : index
    %c0_5 = arith.constant 0 : index
    %5 = vector.load %arg4[%c0_4, %c0_5] : memref<16x128xf32, #tpu.memory_space<vmem>>, vector<16x128xf32>
    %6 = arith.subf %3, %4 : vector<16x128xf32>
    %7 = arith.mulf %6, %6 : vector<16x128xf32>
    %8 = math.log %3 : vector<16x128xf32>
    %cst = arith.constant -1.000000e+02 : f32
    %9 = vector.broadcast %cst : f32 to vector<16x128xf32>
    %10 = arith.maximumf %8, %9 : vector<16x128xf32>
    %cst_6 = arith.constant 0.000000e+00 : f32
    %11 = vector.broadcast %cst_6 : f32 to vector<16x128xf32>
    %12 = arith.subf %11, %3 : vector<16x128xf32>
    %13 = math.log1p %12 : vector<16x128xf32>
    %cst_7 = arith.constant -1.000000e+02 : f32
    %14 = vector.broadcast %cst_7 : f32 to vector<16x128xf32>
    %15 = arith.maximumf %13, %14 : vector<16x128xf32>
    %16 = arith.subf %10, %15 : vector<16x128xf32>
    %17 = arith.mulf %5, %16 : vector<16x128xf32>
    %18 = arith.addf %17, %15 : vector<16x128xf32>
    %c0_8 = arith.constant 0 : index
    %c0_9 = arith.constant 0 : index
    %19 = vector.load %arg6[%c0_8, %c0_9] : memref<8x128xf32, #tpu.memory_space<vmem>>, vector<8x128xf32>
    %20 = vector.shape_cast %7 : vector<16x128xf32> to vector<2x8x128xf32>
    %cst_10 = arith.constant dense<0.000000e+00> : vector<8x128xf32>
    %21 = vector.multi_reduction <add>, %20, %cst_10 [0] : vector<2x8x128xf32> to vector<8x128xf32>
    %22 = arith.addf %19, %21 : vector<8x128xf32>
    %c0_11 = arith.constant 0 : index
    %c0_12 = arith.constant 0 : index
    %23 = vector.load %arg6[%c0_11, %c0_12] : memref<8x128xf32, #tpu.memory_space<vmem>>, vector<8x128xf32>
    tpu.vector_store %arg6[%c0_11, %c0_12], %22 {strides = array<i32>} : memref<8x128xf32, #tpu.memory_space<vmem>>, vector<8x128xf32>,
    %c0_13 = arith.constant 0 : index
    %c0_14 = arith.constant 0 : index
    %24 = vector.load %arg7[%c0_13, %c0_14] : memref<8x128xf32, #tpu.memory_space<vmem>>, vector<8x128xf32>
    %25 = vector.shape_cast %18 : vector<16x128xf32> to vector<2x8x128xf32>
    %cst_15 = arith.constant dense<0.000000e+00> : vector<8x128xf32>
    %26 = vector.multi_reduction <add>, %25, %cst_15 [0] : vector<2x8x128xf32> to vector<8x128xf32>
    %27 = arith.addf %24, %26 : vector<8x128xf32>
    %c0_16 = arith.constant 0 : index
    %c0_17 = arith.constant 0 : index
    %28 = vector.load %arg7[%c0_16, %c0_17] : memref<8x128xf32, #tpu.memory_space<vmem>>, vector<8x128xf32>
    tpu.vector_store %arg7[%c0_16, %c0_17], %27 {strides = array<i32>} : memref<8x128xf32, #tpu.memory_space<vmem>>, vector<8x128xf32>,
    %c0_i32_18 = arith.constant 0 : i32
    %29 = arith.cmpi eq, %arg1, %c0_i32_18 : i32
    %30 = arith.extui %29 : i1 to i32
    %c0_i32_19 = arith.constant 0 : i32
    %31 = arith.cmpi ne, %30, %c0_i32_19 : i32
    scf.if %31 {
      %c0_20 = arith.constant 0 : index
      %c0_21 = arith.constant 0 : index
      %32 = vector.load %arg6[%c0_20, %c0_21] : memref<8x128xf32, #tpu.memory_space<vmem>>, vector<8x128xf32>
      %cst_22 = arith.constant dense<0.000000e+00> : vector<128xf32>
      %33 = vector.multi_reduction <add>, %32, %cst_22 [0] : vector<8x128xf32> to vector<128xf32>
      %34 = vector.shape_cast %33 : vector<128xf32> to vector<1x128xf32>
      %c0_23 = arith.constant 0 : index
      %c0_24 = arith.constant 0 : index
      %35 = vector.load %arg7[%c0_23, %c0_24] : memref<8x128xf32, #tpu.memory_space<vmem>>, vector<8x128xf32>
      %cst_25 = arith.constant dense<0.000000e+00> : vector<128xf32>
      %36 = vector.multi_reduction <add>, %35, %cst_25 [0] : vector<8x128xf32> to vector<128xf32>
      %37 = vector.shape_cast %36 : vector<128xf32> to vector<1x128xf32>
      %cst_26 = arith.constant 0.699999988 : f32
      %38 = vector.broadcast %cst_26 : f32 to vector<1x128xf32>
      %39 = arith.mulf %38, %34 : vector<1x128xf32>
      %cst_27 = arith.constant 3.000000e-01 : f32
      %40 = vector.broadcast %cst_27 : f32 to vector<1x128xf32>
      %41 = arith.mulf %40, %37 : vector<1x128xf32>
      %42 = arith.subf %39, %41 : vector<1x128xf32>
      %43 = vector.shape_cast %42 : vector<1x128xf32> to vector<1x1x128xf32>
      %c0_28 = arith.constant 0 : index
      %c0_29 = arith.constant 0 : index
      %c0_30 = arith.constant 0 : index
      %44 = vector.load %arg5[%c0_28, %c0_29, %c0_30] : memref<1x1x128xf32, #tpu.memory_space<vmem>>, vector<1x1x128xf32>
      tpu.vector_store %arg5[%c0_28, %c0_29, %c0_30], %43 {strides = array<i32>} : memref<1x1x128xf32, #tpu.memory_space<vmem>>, vector<1x1x128xf32>,
    } else {
    }
    return
  }
  func.func @transform_0(%arg0: i32, %arg1: i32) -> (i32, i32) {
    %c1_i32 = arith.constant 1 : i32
    %0 = arith.muli %arg0, %c1_i32 : i32
    %1 = arith.addi %0, %arg1 : i32
    %c0_i32 = arith.constant 0 : i32
    %c0_i32_0 = arith.constant 0 : i32
    return %1, %c0_i32 : i32, i32
  }
  func.func @transform_1(%arg0: i32, %arg1: i32) -> (i32, i32) {
    %c1_i32 = arith.constant 1 : i32
    %0 = arith.muli %arg0, %c1_i32 : i32
    %1 = arith.addi %0, %arg1 : i32
    %c0_i32 = arith.constant 0 : i32
    %c0_i32_0 = arith.constant 0 : i32
    return %1, %c0_i32 : i32, i32
  }
  func.func @transform_2(%arg0: i32, %arg1: i32) -> (i32, i32) {
    %c1_i32 = arith.constant 1 : i32
    %0 = arith.muli %arg0, %c1_i32 : i32
    %1 = arith.addi %0, %arg1 : i32
    %c0_i32 = arith.constant 0 : i32
    %c0_i32_0 = arith.constant 0 : i32
    return %1, %c0_i32 : i32, i32
  }
  func.func @transform_3(%arg0: i32, %arg1: i32) -> (i32, i32, i32) {
    %c0_i32 = arith.constant 0 : i32
    %c0_i32_0 = arith.constant 0 : i32
    %c0_i32_1 = arith.constant 0 : i32
    return %arg0, %c0_i32, %c0_i32_0 : i32, i32, i32
  }
}

</mosaic_0001>

<llo_original>
// kernel: tpu_custom_call.1
$region0: #{tpu_custom_call.1}
  #allocation0 [shape = 'u32[]', space=smem, size = 0x4, offset = 0x4, fixed_abs, tag = 'smem constant byte address 0x4 - core index']
  #allocation1 [shape = 'u32[144,128]{1,0:T(1,128)}', space=vmem, size = 0x12000, scoped, tag = 'internal scratch']
  #allocation2 [shape = 'f32[8,128]{1,0:T(8,128)}', space=vmem, size = 0x1000, scoped, tag = 'scratch operand']
  #allocation3 [shape = 'f32[8,128]{1,0:T(8,128)}', space=vmem, size = 0x1000, scoped, tag = 'scratch operand']
  %s0 = inlined_call_operand.hbm [shape: f32[16,128], index: 0, kind: input, shape index: {}]
  %s1 = inlined_call_operand.hbm [shape: f32[16,128], index: 1, kind: input, shape index: {}]
  %s2 = inlined_call_operand.hbm [shape: f32[16,128], index: 2, kind: input, shape index: {}]
  %s3 = inlined_call_operand.hbm [shape: f32[1,1,128], index: 3, kind: output, shape index: {}]
  %s4 = sld [smem:[#allocation0]]
  $region42: #{tpu_custom_call.1} parent=0
    _
  %s6 = ssub.s32 1, %s4
  %s7 = scalar_select 0, %s6, %s4
  $region1: #{tpu_custom_call.1} parent=0
    #allocation4 [shape = 'u8[8192]{0}', space=vmem, size = 0x2000, scoped, tag = 'input window, operand 0, single buffered']
    #allocation5 [shape = 's32[1]{0}', space=sflag, size = 0x4, scoped, tag = 'scoped memory for tpu_custom_call.1']
    #allocation6 [shape = 's32[1]{0}', space=sflag, size = 0x4, scoped, tag = 'scoped memory for tpu_custom_call.1']
    #allocation7 [shape = 'u8[8192]{0}', space=vmem, size = 0x2000, scoped, tag = 'input window, operand 1, single buffered']
    #allocation8 [shape = 's32[1]{0}', space=sflag, size = 0x4, scoped, tag = 'scoped memory for tpu_custom_call.1']
    #allocation9 [shape = 'u8[8192]{0}', space=vmem, size = 0x2000, scoped, tag = 'input window, operand 2, single buffered']
    #allocation10 [shape = 'u8[512]{0}', space=vmem, size = 0x400, scoped, tag = 'output window, operand 0, single buffered']
    %8 = vsyncpa [#allocation5], 0
    %9 = vsyncpa [#allocation8], 0
    %10 = vsyncpa [#allocation6], 0
    // Predicated region
    $region2: #{tpu_custom_call.1} parent=1 // pred_check
      _
    $region3: #{tpu_custom_call.1} parent=1 // pred_check_branch
      %12 = sbr.rel (0) target = $region5
    $region4: #{tpu_custom_call.1} parent=1 // pred_region
      %s13 = sadd.s32 0, 0
      %s14 = smul.u32 2, %s13
      %s16 = ssub.s32 256, 256
      %17 = vsyncadd [#allocation5], %s16
      %s18 = smul.addr %s14, 128
      %s19 = scalar_lea.hbm %s0, %s18
      %s20 = sshll.u32 [#allocation4], 4
      %s21 = int_to_ptr.vmem [resolvable:$true] %s20
      %26 = dma.hbm_to_vmem [thread:$0]  %s19, 256, %s21, [#allocation5], 128, 128, 8
    $region5: #{tpu_custom_call.1} parent=1 // pred_fallthru
      _
    // Predicated region
    $region6: #{tpu_custom_call.1} parent=1 // pred_check
      _
    $region7: #{tpu_custom_call.1} parent=1 // pred_check_branch
      %28 = sbr.rel (0) target = $region9
    $region8: #{tpu_custom_call.1} parent=1 // pred_region
      %s29 = sadd.s32 0, 0
      %s30 = smul.u32 2, %s29
      %s32 = ssub.s32 256, 256
      %33 = vsyncadd [#allocation8], %s32
      %s34 = smul.addr %s30, 128
      %s35 = scalar_lea.hbm %s1, %s34
      %s36 = sshll.u32 [#allocation7], 4
      %s37 = int_to_ptr.vmem [resolvable:$true] %s36
      %42 = dma.hbm_to_vmem [thread:$0]  %s35, 256, %s37, [#allocation8], 128, 128, 8
    $region9: #{tpu_custom_call.1} parent=1 // pred_fallthru
      _
    // Predicated region
    $region10: #{tpu_custom_call.1} parent=1 // pred_check
      _
    $region11: #{tpu_custom_call.1} parent=1 // pred_check_branch
      %44 = sbr.rel (0) target = $region13
    $region12: #{tpu_custom_call.1} parent=1 // pred_region
      %s45 = sadd.s32 0, 0
      %s46 = smul.u32 2, %s45
      %s48 = ssub.s32 256, 256
      %49 = vsyncadd [#allocation8], %s48
      %s50 = smul.addr %s46, 128
      %s51 = scalar_lea.hbm %s2, %s50
      %s52 = sshll.u32 [#allocation9], 4
      %s53 = int_to_ptr.vmem [resolvable:$true] %s52
      %58 = dma.hbm_to_vmem [thread:$0]  %s51, 256, %s53, [#allocation8], 128, 128, 8
    $region13: #{tpu_custom_call.1} parent=1 // pred_fallthru
      _
    // Predicated region
    $region14: #{tpu_custom_call.1} parent=1 // pred_check
      _
    $region15: #{tpu_custom_call.1} parent=1 // pred_check_branch
      %60 = sbr.rel (0) target = $region17
    $region16: #{tpu_custom_call.1} parent=1 // pred_region
      %61 = dma.done [#allocation5], 256
    $region17: #{tpu_custom_call.1} parent=1 // pred_fallthru
      _
    // Predicated region
    $region18: #{tpu_custom_call.1} parent=1 // pred_check
      _
    $region19: #{tpu_custom_call.1} parent=1 // pred_check_branch
      %63 = sbr.rel (0) target = $region21
    $region20: #{tpu_custom_call.1} parent=1 // pred_region
      %64 = dma.done [#allocation8], 256
    $region21: #{tpu_custom_call.1} parent=1 // pred_fallthru
      _
    // Predicated region
    $region22: #{tpu_custom_call.1} parent=1 // pred_check
      _
    $region23: #{tpu_custom_call.1} parent=1 // pred_check_branch
      %66 = sbr.rel (0) target = $region25
    $region24: #{tpu_custom_call.1} parent=1 // pred_region
      %67 = dma.done [#allocation8], 256
    $region25: #{tpu_custom_call.1} parent=1 // pred_fallthru
      _
    %s68 = sadd.s32 0, 0
    %s69 = smul.u32 2, %s68
    %s70 = sadd.s32 0, 0
    %s71 = smul.u32 2, %s70
    %s72 = sadd.s32 0, 0
    %s73 = smul.u32 2, %s72
    %p74 = scmp.eq.s32.totalorder 0, 0
    // Predicated region
    $region26: #{tpu_custom_call.1} parent=1 // pred_check
      %p75 = pneg %p74
    $region27: #{tpu_custom_call.1} parent=1 // pred_check_branch
      %77 = sbr.rel (%p75) target = $region29
    $region28: #{tpu_custom_call.1} parent=1 // pred_region
      %78 = vst [vmem:[#allocation2] sm:$0xff] 0.0
      %79 = vst [vmem:[#allocation3] sm:$0xff] 0.0
    $region29: #{tpu_custom_call.1} parent=1 // pred_fallthru
      _
    %v80 = vld [vmem:[#allocation4] sm:$0xff]
    %v81 = vld [vmem:[#allocation4 + $0x8] sm:$0xff]
    %v82 = vld [vmem:[#allocation7] sm:$0xff]
    %v83 = vld [vmem:[#allocation7 + $0x8] sm:$0xff]
    %v84 = vld [vmem:[#allocation9] sm:$0xff]
    %v85 = vld [vmem:[#allocation9 + $0x8] sm:$0xff]
    %v86 = vsub.f32 %v80, %v82
    %v87 = vsub.f32 %v81, %v83
    %v88 = vmul.f32 %v86, %v86
    %v89 = vmul.f32 %v87, %v87
    %v90 = vlog2.pop %v80
    %v91 = vmul.f32 %v90, 0.6931472
    %v92 = vlog2.pop %v81
    %v93 = vmul.f32 %v92, 0.6931472
    %v94 = vmax.f32 %v91, -100.0
    %v95 = vmax.f32 %v93, -100.0
    %v96 = vsub.f32 0.0, %v80
    %v97 = vsub.f32 0.0, %v81
    %v98 = vadd.f32 %v96, 1.0
    %v99 = vlog2.pop %v98
    %v100 = vmul.f32 %v99, 0.6931472
    %v101 = vmul.f32 -0.5, %v96
    %v102 = vadd.f32 %v101, 1.0
    %v103 = vmul.f32 %v102, %v96
    %v104 = vand.u32 2147483647, %v96
    %vm105 = vcmp.lt.f32.partialorder %v104, 0.0004427343
    %v106 = vsel %vm105, %v103, %v100
    %v107 = vadd.f32 %v97, 1.0
    %v108 = vlog2.pop %v107
    %v109 = vmul.f32 %v108, 0.6931472
    %v110 = vmul.f32 -0.5, %v97
    %v111 = vadd.f32 %v110, 1.0
    %v112 = vmul.f32 %v111, %v97
    %v113 = vand.u32 2147483647, %v97
    %vm114 = vcmp.lt.f32.partialorder %v113, 0.0004427343
    %v115 = vsel %vm114, %v112, %v109
    %v116 = vmax.f32 %v106, -100.0
    %v117 = vmax.f32 %v115, -100.0
    %v118 = vsub.f32 %v94, %v116
    %v119 = vsub.f32 %v95, %v117
    %v120 = vmul.f32 %v84, %v118
    %v121 = vmul.f32 %v85, %v119
    %v122 = vadd.f32 %v120, %v116
    %v123 = vadd.f32 %v121, %v117
    %v124 = vld [vmem:[#allocation2] sm:$0xff]
    %v125 = vadd.f32 %v88, %v89
    %v126 = vadd.f32 %v124, %v125
    %127 = vst [vmem:[#allocation2] sm:$0xff] %v126
    %v128 = vld [vmem:[#allocation3] sm:$0xff]
    %v129 = vadd.f32 %v122, %v123
    %v130 = vadd.f32 %v128, %v129
    %131 = vst [vmem:[#allocation3] sm:$0xff] %v130
    // Predicated region
    $region30: #{tpu_custom_call.1} parent=1 // pred_check
      %p132 = pneg %p74
    $region31: #{tpu_custom_call.1} parent=1 // pred_check_branch
      %134 = sbr.rel (%p132) target = $region33
    $region32: #{tpu_custom_call.1} parent=1 // pred_region
      %v135 = vld [vmem:[#allocation2] sm:$0xff]
      %v136 = vrot.slane %v135, 4
      %v137 = vadd.f32 %v135, %v136
      %v138 = vrot.slane %v137, 2
      %v139 = vadd.f32 %v137, %v138
      %v140 = vrot.slane %v139, 1
      %v141 = vadd.f32 %v139, %v140
      %v142 = vld [vmem:[#allocation3] sm:$0xff]
      %v143 = vrot.slane %v142, 4
      %v144 = vadd.f32 %v142, %v143
      %v145 = vrot.slane %v144, 2
      %v146 = vadd.f32 %v144, %v145
      %v147 = vrot.slane %v146, 1
      %v148 = vadd.f32 %v146, %v147
      %v149 = vmul.f32 %v141, 0.7
      %v150 = vmul.f32 %v148, 0.3
      %v151 = vsub.f32 %v149, %v150
      %152 = vst [vmem:[#allocation10] sm:$0x1] %v151
    $region33: #{tpu_custom_call.1} parent=1 // pred_fallthru
      _
    // Predicated region
    $region34: #{tpu_custom_call.1} parent=1 // pred_check
      _
    $region35: #{tpu_custom_call.1} parent=1 // pred_check_branch
      %154 = sbr.rel (0) target = $region37
    $region36: #{tpu_custom_call.1} parent=1 // pred_region
      %s156 = ssub.s32 16, 16
      %157 = vsyncadd [#allocation6], %s156
      %s159 = sshll.u32 [#allocation10], 4
      %s160 = int_to_ptr.vmem [resolvable:$true] %s159
      %162 = dma.vmem_to_hbm [thread:$0]  %s160, 16, %s3, [#allocation6]
    $region37: #{tpu_custom_call.1} parent=1 // pred_fallthru
      _
    // Predicated region
    $region38: #{tpu_custom_call.1} parent=1 // pred_check
      _
    $region39: #{tpu_custom_call.1} parent=1 // pred_check_branch
      %164 = sbr.rel (0) target = $region41
    $region40: #{tpu_custom_call.1} parent=1 // pred_region
      %165 = dma.done [#allocation6], 16
    $region41: #{tpu_custom_call.1} parent=1 // pred_fallthru
      _
    %166 = vsyncpa [#allocation5], 1
    %167 = vsyncpa [#allocation8], 1
    %168 = vsyncpa [#allocation6], 1

</llo_original>
